<compile_context>
chip_gen: v7x
topology: tpu7x:2x2x1
jax: 0.10.0
libtpu: 0.0.40
codegen_flags: <defaults>
</compile_context>

<pallas_src>
import functools

import numpy as np

import jax
import jax.numpy as jnp
from jax import lax
from jax.experimental import pallas as pl
from jax.experimental.pallas import tpu as pltpu


# ----------------------------------------------------------------------------- utils
def _silu(x):
    return x * (1.0 / (1.0 + jnp.exp(-x)))


def _round_up(x, m):
    return ((x + m - 1) // m) * m


def _vmem_limit_bytes():
    # Generation-aware scoped-VMEM limit: ~3/4 of reported capacity
    # (~96 MiB on 128 MiB parts (v5e/v6e), ~48 MiB on v7x's 64 MiB).
    try:
        return int(pltpu.get_tpu_info().vmem_capacity_bytes * 3 // 4)
    except Exception:
        return None


_VMEM_LIMIT = _vmem_limit_bytes()


def _full_vmem_spec():
    return pl.BlockSpec(memory_space=pltpu.MemorySpace.VMEM)


# ------------------------------------------------------------------ E_GCL_mask kernel
def egcl_mask_kernel(
    # per-tile edge streams
    rc_ref, rowt_ref, ee_ref,
    # per-graph node blocks
    h_ref, h0_ref, coord_ref,
    # resident weights / constants
    w1s_ref, w1t_ref, w1r_ref, w1e_ref, b1_ref,
    we2_ref, be2_ref,
    wc1_ref, bc1_ref, wc2r_ref,
    erep_ref, ered_ref,
    wn1h_ref, wn1a_ref, wn1n_ref, bn1_ref, wn2_ref, bn2_ref,
    wadj_ref, badj_ref,
    # output
    out_ref,
    # scratch (per-graph accumulators + node-level gather payloads)
    acch_ref, accc_ref, gsrc_ref, gtgt_ref,
    *, m_in, coords_weight, gather_dtype,
):
    n_pad = h_ref.shape[0]
    te = rc_ref.shape[0]
    t = pl.program_id(1)

    # ---- per-graph init: zero accumulators, precompute h@W1 gather payloads --------
    @pl.when(t == 0)
    def _init():
        acch_ref[...] = jnp.zeros_like(acch_ref)
        accc_ref[...] = jnp.zeros_like(accc_ref)
        h = h_ref[...]
        gsrc_ref[...] = jnp.dot(
            h, w1s_ref[...], preferred_element_type=jnp.float32).astype(gsrc_ref.dtype)
        gtgt_ref[...] = jnp.dot(
            h, w1t_ref[...], preferred_element_type=jnp.float32).astype(gtgt_ref.dtype)

    # ---- one-hot gather matrices over THIS graph's node block (built in-register) ---
    lane = lax.broadcasted_iota(jnp.int32, (te, n_pad), 1)
    r1f = (lane == rc_ref[:, 0:1]).astype(jnp.float32)          # row one-hot [TE, n_pad]
    c1f = (lane == rc_ref[:, 1:2]).astype(jnp.float32)          # col one-hot [TE, n_pad]

    # coord_diff in f32 (exact: +/-1 selection matmul against f32 coords)
    cd = jnp.dot(r1f - c1f, coord_ref[...], preferred_element_type=jnp.float32)  # [TE, 3*m_in]
    radial = (
        cd[:, 0 * m_in:1 * m_in] ** 2
        + cd[:, 1 * m_in:2 * m_in] ** 2
        + cd[:, 2 * m_in:3 * m_in] ** 2
    )                                                            # [TE, m_in]

    # h@W1 gathers (payload in gather_dtype; one-hots exact in any dtype)
    hs_row = jnp.dot(r1f.astype(gather_dtype), gsrc_ref[...],
                     preferred_element_type=jnp.float32)
    ht_col = jnp.dot(c1f.astype(gather_dtype), gtgt_ref[...],
                     preferred_element_type=jnp.float32)

    emask = ee_ref[:, 0:1]                                       # [TE, 1]
    eattr = ee_ref[:, 1:]                                        # [TE, F]

    # ---- edge_mlp: Linear -> SiLU -> Linear -> SiLU, then edge mask -----------------
    x = (
        hs_row
        + ht_col
        + jnp.dot(radial, w1r_ref[...], preferred_element_type=jnp.float32)
        + jnp.dot(eattr, w1e_ref[...], preferred_element_type=jnp.float32)
        + b1_ref[...]
    )
    x = _silu(x)
    edge_feat = _silu(
        jnp.dot(x, we2_ref[...], preferred_element_type=jnp.float32) + be2_ref[...]
    )
    edge_feat = edge_feat * emask                                # [TE, H]

    # ---- coord_mlp + per-edge channel mixing: trans = coord_diff @ mat --------------
    y = _silu(
        jnp.dot(edge_feat, wc1_ref[...], preferred_element_type=jnp.float32) + bc1_ref[...]
    )
    mat_rep = jnp.dot(y, wc2r_ref[...], preferred_element_type=jnp.float32)
    cd_rep = jnp.dot(cd, erep_ref[...], preferred_element_type=jnp.float32)
    trans = jnp.dot(cd_rep * mat_rep, ered_ref[...], preferred_element_type=jnp.float32)
    trans = trans * emask                                        # [TE, 3*m_out]

    # ---- scatter: transposed one-hot built directly (no XLU transpose), two matmuls -
    node_iota = lax.broadcasted_iota(jnp.int32, (n_pad, te), 0)
    rt = (node_iota == rowt_ref[0:1, :]).astype(gather_dtype)    # [n_pad, TE]
    acch_ref[...] += jnp.dot(rt, edge_feat.astype(gather_dtype),
                             preferred_element_type=jnp.float32)
    accc_ref[...] += jnp.dot(rt, trans.astype(gather_dtype),
                             preferred_element_type=jnp.float32)

    # ---- finalize on the last edge tile of this graph: node_mlp + coord update ------
    @pl.when(t == pl.num_programs(1) - 1)
    def _finalize():
        h = h_ref[...]
        z = _silu(
            jnp.dot(h, wn1h_ref[...], preferred_element_type=jnp.float32)
            + jnp.dot(acch_ref[...], wn1a_ref[...], preferred_element_type=jnp.float32)
            + jnp.dot(h0_ref[...], wn1n_ref[...], preferred_element_type=jnp.float32)
            + bn1_ref[...]
        )
        h_new = h + jnp.dot(z, wn2_ref[...], preferred_element_type=jnp.float32) + bn2_ref[...]
        # coord_adjust (identity block-diag when m_in == m_out), then residual update
        coord_new = (
            jnp.dot(coord_ref[...], wadj_ref[...], preferred_element_type=jnp.float32)
            + badj_ref[...]
            + accc_ref[...] * coords_weight
        )
        out_ref[...] = jnp.concatenate([h_new, coord_new], axis=1)


def egcl_mask_layer(lp, h, h0, coord, rc, rowt, ee, *, batch, n_pad, te, n_tiles,
                    hidden_nf, m_in, m_out, coords_weight, gather_dtype):
    c_out = 3 * m_out
    out_w = hidden_nf + c_out

    edge_idx = lambda g, t: (g * n_tiles + t, 0)
    node_idx = lambda g, t: (g, 0)
    const_idx = lambda g, t: (0, 0)

    weights = (
        lp["w1_src"], lp["w1_tgt"], lp["w1_rad"], lp["w1_eat"], lp["b1"],
        lp["we2"], lp["be2"],
        lp["wc1"], lp["bc1"], lp["wc2_rep"],
        lp["erep"], lp["ered"],
        lp["wn1_h"], lp["wn1_agg"], lp["wn1_attr"], lp["bn1"],
        lp["wn2"], lp["bn2"],
        lp["wadj"], lp["badj"],
    )
    in_specs = (
        [
            pl.BlockSpec((te, rc.shape[1]), edge_idx),     # [row | col] int32
            pl.BlockSpec((8, te), lambda g, t: (g, t)),    # row in lane layout, int32
            pl.BlockSpec((te, ee.shape[1]), edge_idx),     # [edge_mask | edge_attr] f32
            pl.BlockSpec((n_pad, h.shape[1]), node_idx),
            pl.BlockSpec((n_pad, h0.shape[1]), node_idx),
            pl.BlockSpec((n_pad, coord.shape[1]), node_idx),
        ]
        + [pl.BlockSpec(w.shape, const_idx) for w in weights]
    )

    kernel = functools.partial(
        egcl_mask_kernel, m_in=m_in, coords_weight=coords_weight, gather_dtype=gather_dtype,
    )
    out = pl.pallas_call(
        kernel,
        grid=(batch, n_tiles),
        in_specs=in_specs,
        out_specs=pl.BlockSpec((n_pad, out_w), node_idx),
        out_shape=jax.ShapeDtypeStruct((batch * n_pad, out_w), jnp.float32),
        scratch_shapes=[
            pltpu.VMEM((n_pad, hidden_nf), jnp.float32),   # segment_sum(edge_feat)
            pltpu.VMEM((n_pad, c_out), jnp.float32),       # segment_sum(trans)
            pltpu.VMEM((n_pad, hidden_nf), gather_dtype),  # h @ W1_src
            pltpu.VMEM((n_pad, hidden_nf), gather_dtype),  # h @ W1_tgt
        ],
        compiler_params=pltpu.CompilerParams(
            dimension_semantics=("parallel", "arbitrary"),
            vmem_limit_bytes=_VMEM_LIMIT,
        ),
    )(rc, rowt, ee, h, h0, coord, *weights)
    return out[:, :hidden_nf], out[:, hidden_nf:]


# ------------------------------------------------------------------ embedding kernel
def _embed_kernel(h0_ref, w_ref, b_ref, out_ref):
    out_ref[...] = (
        jnp.dot(h0_ref[...], w_ref[...], preferred_element_type=jnp.float32) + b_ref[...]
    )


def embed(params, h0):
    n = h0.shape[0]
    hd = params["emb_w"].shape[1]
    return pl.pallas_call(
        _embed_kernel,
        out_shape=jax.ShapeDtypeStruct((n, hd), jnp.float32),
        in_specs=[_full_vmem_spec()] * 3,
        out_specs=_full_vmem_spec(),
    )(h0.astype(jnp.float32), params["emb_w"], params["emb_b"])


# -------------------------------------------------------------------- readout kernel
def _readout_kernel(h_ref, nmask_ref,
                    wd1_ref, bd1_ref, wd2_ref, bd2_ref,
                    wg1_ref, bg1_ref, wg2_ref, bg2_ref,
                    out_ref, *, n_pad):
    h = _silu(jnp.dot(h_ref[...], wd1_ref[...], preferred_element_type=jnp.float32) + bd1_ref[...])
    h = jnp.dot(h, wd2_ref[...], preferred_element_type=jnp.float32) + bd2_ref[...]
    h = h * nmask_ref[...]
    n_total = h_ref.shape[0]
    b = out_ref.shape[0]
    # per-graph segment sum as a small one-hot matmul built from iota compares
    node_idx = lax.broadcasted_iota(jnp.int32, (b, n_total), 1)
    gid = lax.broadcasted_iota(jnp.int32, (b, n_total), 0)
    gsel = ((node_idx >= gid * n_pad) & (node_idx < (gid + 1) * n_pad)).astype(jnp.float32)
    gh = jnp.dot(gsel, h, preferred_element_type=jnp.float32)        # [B, H]
    g = _silu(jnp.dot(gh, wg1_ref[...], preferred_element_type=jnp.float32) + bg1_ref[...])
    out_ref[...] = jnp.dot(g, wg2_ref[...], preferred_element_type=jnp.float32) + bg2_ref[...]


def readout(params, h, node_mask, *, n_pad, batch):
    kernel = functools.partial(_readout_kernel, n_pad=n_pad)
    pred = pl.pallas_call(
        kernel,
        out_shape=jax.ShapeDtypeStruct((batch, 1), jnp.float32),
        in_specs=[_full_vmem_spec()] * 10,
        out_specs=_full_vmem_spec(),
    )(h, node_mask,
      params["dec_w1"], params["dec_b1"], params["dec_w2"], params["dec_b2"],
      params["g_w1"], params["g_b1"], params["g_w2"], params["g_b2"])
    return pred[:, 0]


# --------------------------------------------------------------------- parameters
def _uniform(key, shape, fan_in):
    bound = 1.0 / float(np.sqrt(fan_in))
    return jax.random.uniform(key, shape, jnp.float32, -bound, bound)


def _expand_reduce_mats(m_in, m_out):
    # cd_rep = cd @ erep ; trans = (cd_rep * mat_rep) @ ered  (exact 0/1 matrices)
    erep = np.zeros((3 * m_in, 3 * m_in * m_out), np.float32)
    ered = np.zeros((3 * m_in * m_out, 3 * m_out), np.float32)
    for c in range(3):
        for i in range(m_in):
            for o in range(m_out):
                col = c * m_in * m_out + i * m_out + o
                erep[c * m_in + i, col] = 1.0
                ered[col, c * m_out + o] = 1.0
    return jnp.asarray(erep), jnp.asarray(ered)


def _init_layer_params(key, in_node_nf, in_edge_nf, hidden_nf, m_in, m_out):
    ks = jax.random.split(key, 13)
    hd = hidden_nf
    fin_e = 2 * hd + m_in + in_edge_nf
    we1 = _uniform(ks[0], (fin_e, hd), fin_e)
    p = {
        "w1_src": we1[:hd],
        "w1_tgt": we1[hd:2 * hd],
        "w1_rad": we1[2 * hd:2 * hd + m_in],
        "w1_eat": we1[2 * hd + m_in:],
        "b1": _uniform(ks[1], (1, hd), fin_e),
        "we2": _uniform(ks[2], (hd, hd), hd),
        "be2": _uniform(ks[3], (1, hd), hd),
        "wc1": _uniform(ks[4], (hd, hd), hd),
        "bc1": _uniform(ks[5], (1, hd), hd),
    }
    # final coord layer: xavier_uniform gain=0.001, no bias; pre-tiled across the 3 axes
    a = 0.001 * float(np.sqrt(6.0 / (hd + m_in * m_out)))
    wc2 = jax.random.uniform(ks[6], (hd, m_in * m_out), jnp.float32, -a, a)
    p["wc2_rep"] = jnp.tile(wc2, (1, 3))

    fin_n = 2 * hd + in_node_nf
    wn1 = _uniform(ks[7], (fin_n, hd), fin_n)
    p["wn1_h"] = wn1[:hd]
    p["wn1_agg"] = wn1[hd:2 * hd]
    p["wn1_attr"] = wn1[2 * hd:]
    p["bn1"] = _uniform(ks[8], (1, hd), fin_n)
    p["wn2"] = _uniform(ks[9], (hd, hd), hd)
    p["bn2"] = _uniform(ks[10], (1, hd), hd)

    if m_in != m_out:
        wadj = _uniform(ks[11], (m_in, m_out), m_in)
        badj = _uniform(ks[12], (1, m_out), m_in)
    else:
        wadj = jnp.eye(m_in, dtype=jnp.float32)
        badj = jnp.zeros((1, m_out), jnp.float32)
    wblk = jnp.zeros((3 * m_in, 3 * m_out), jnp.float32)
    for c in range(3):
        wblk = wblk.at[c * m_in:(c + 1) * m_in, c * m_out:(c + 1) * m_out].set(wadj)
    p["wadj"] = wblk
    p["badj"] = jnp.tile(badj, (1, 3))

    erep, ered = _expand_reduce_mats(m_in, m_out)
    p["erep"] = erep
    p["ered"] = ered
    return p


def init_mcegnn_params(key, in_node_nf, in_edge_nf, hidden_nf, m, n_layers):
    keys = jax.random.split(key, n_layers + 10)
    hd = hidden_nf
    params = {
        "emb_w": _uniform(keys[0], (in_node_nf, hd), in_node_nf),
        "emb_b": _uniform(keys[1], (1, hd), in_node_nf),
        "layers": [],
        "dec_w1": _uniform(keys[2 + n_layers], (hd, hd), hd),
        "dec_b1": _uniform(keys[3 + n_layers], (1, hd), hd),
        "dec_w2": _uniform(keys[4 + n_layers], (hd, hd), hd),
        "dec_b2": _uniform(keys[5 + n_layers], (1, hd), hd),
        "g_w1": _uniform(keys[6 + n_layers], (hd, hd), hd),
        "g_b1": _uniform(keys[7 + n_layers], (1, hd), hd),
        "g_w2": _uniform(keys[8 + n_layers], (hd, 1), hd),
        "g_b2": _uniform(keys[9 + n_layers], (1, 1), hd),
    }
    for l in range(n_layers):
        m_in = 1 if l == 0 else m
        m_out = 1 if l == n_layers - 1 else m
        params["layers"].append(
            _init_layer_params(keys[2 + l], in_node_nf, in_edge_nf, hidden_nf, m_in, m_out)
        )
    return params


# ----------------------------------------------------------------------- full forward
def mcegnn_forward(params, h0, x, row, col, edge_attr, node_mask, edge_mask, *,
                   hidden_nf, m, n_layers, n_nodes, coords_weight=1.0, edge_tile=256,
                   gather_dtype=jnp.bfloat16):
    h0 = h0.astype(jnp.float32)
    n_total = h0.shape[0]
    batch = n_total // n_nodes
    assert batch * n_nodes == n_total
    e = int(row.shape[0])
    assert e % batch == 0, "edges must be grouped per graph with equal counts"
    e_g = e // batch
    f_edge = edge_attr.shape[1]

    # edge tile: fill the MXU on real sizes; shrink for tiny demo graphs
    if e_g >= edge_tile:
        assert edge_tile % 128 == 0
        te = edge_tile
    else:
        te = max(16, _round_up(e_g, 16))
    e_g_pad = _round_up(e_g, te)
    n_tiles = e_g_pad // te
    n_pad = _round_up(n_nodes, 8)
    pad_e = e_g_pad - e_g

    # graph-local edge indices, grouped/padded per graph.
    # Padded edges point at local node 0 and carry edge_mask = 0 -> contribute zero.
    goff = (jnp.arange(batch, dtype=jnp.int32) * n_nodes)[:, None]
    row_g = row.reshape(batch, e_g).astype(jnp.int32) - goff
    col_g = col.reshape(batch, e_g).astype(jnp.int32) - goff
    row_g = jnp.pad(row_g, ((0, 0), (0, pad_e)))
    col_g = jnp.pad(col_g, ((0, 0), (0, pad_e)))
    rc = jnp.stack([row_g.reshape(-1), col_g.reshape(-1)], axis=1)        # [B*Eg, 2]
    rowt = jnp.broadcast_to(row_g[:, None, :], (batch, 8, e_g_pad)).reshape(batch * 8, e_g_pad)
    ee = jnp.concatenate(
        [edge_mask.reshape(batch, e_g, 1).astype(jnp.float32),
         edge_attr.reshape(batch, e_g, f_edge).astype(jnp.float32)], axis=2)
    ee = jnp.pad(ee, ((0, 0), (0, pad_e), (0, 0))).reshape(batch * e_g_pad, 1 + f_edge)

    # pad node arrays per graph to a multiple-of-8 node block (padded rows masked out)
    def pad_nodes(a):
        a = a.reshape(batch, n_nodes, -1)
        a = jnp.pad(a, ((0, 0), (0, n_pad - n_nodes), (0, 0)))
        return a.reshape(batch * n_pad, -1)

    h0_p = pad_nodes(h0)
    coord = pad_nodes(x.astype(jnp.float32))        # x.unsqueeze(-1): m_in = 1 -> flat [N, 3]
    nmask = pad_nodes(node_mask.reshape(n_total, 1).astype(jnp.float32))

    h = embed(params, h0_p)
    for l in range(n_layers):
        m_in = 1 if l == 0 else m
        m_out = 1 if l == n_layers - 1 else m
        h, coord = egcl_mask_layer(
            params["layers"][l], h, h0_p, coord, rc, rowt, ee,
            batch=batch, n_pad=n_pad, te=te, n_tiles=n_tiles,
            hidden_nf=hidden_nf, m_in=m_in, m_out=m_out,
            coords_weight=coords_weight, gather_dtype=gather_dtype,
        )
    return readout(params, h, nmask, n_pad=n_pad, batch=batch)


# ----------------------------------------------------------- pure NumPy f64 reference
def mcegnn_reference(params, h0, x, row, col, edge_attr, node_mask, edge_mask, *,
                     hidden_nf, m, n_layers, n_nodes, coords_weight=1.0):
    P = lambda a: np.asarray(a, np.float64)

    def silu(v):
        return v / (1.0 + np.exp(-v))

    h0 = P(h0); xc = P(x); edge_attr = P(edge_attr)
    nm = P(node_mask).reshape(-1, 1)
    em = P(edge_mask).reshape(-1, 1)
    row = np.asarray(row); col = np.asarray(col)
    n = h0.shape[0]

    h = h0 @ P(params["emb_w"]) + P(params["emb_b"])
    coord = xc.copy()                                   # flat [N, 3*m_in], m_in = 1
    for l in range(n_layers):
        lp = params["layers"][l]
        m_in = 1 if l == 0 else m
        m_out = 1 if l == n_layers - 1 else m
        cd = coord[row] - coord[col]                    # [E, 3*m_in]
        cd3 = cd.reshape(-1, 3, m_in)
        radial = np.sum(cd3 ** 2, axis=1)               # [E, m_in]
        xe = (h[row] @ P(lp["w1_src"]) + h[col] @ P(lp["w1_tgt"])
              + radial @ P(lp["w1_rad"]) + edge_attr @ P(lp["w1_eat"]) + P(lp["b1"]))
        xe = silu(xe)
        ef = silu(xe @ P(lp["we2"]) + P(lp["be2"])) * em
        y = silu(ef @ P(lp["wc1"]) + P(lp["bc1"]))
        wc2 = P(lp["wc2_rep"])[:, :m_in * m_out]
        mat = (y @ wc2).reshape(-1, m_in, m_out)
        trans = np.einsum("eci,eio->eco", cd3, mat).reshape(-1, 3 * m_out) * em
        agg_c = np.zeros((n, 3 * m_out))
        np.add.at(agg_c, row, trans)
        agg_h = np.zeros((n, hidden_nf))
        np.add.at(agg_h, row, ef)
        coord = coord @ P(lp["wadj"]) + P(lp["badj"]) + agg_c * coords_weight
        z = silu(h @ P(lp["wn1_h"]) + agg_h @ P(lp["wn1_agg"])
                 + h0 @ P(lp["wn1_attr"]) + P(lp["bn1"]))
        h = h + z @ P(lp["wn2"]) + P(lp["bn2"])
    hd = silu(h @ P(params["dec_w1"]) + P(params["dec_b1"]))
    hd = hd @ P(params["dec_w2"]) + P(params["dec_b2"])
    hd = hd * nm
    gh = hd.reshape(-1, n_nodes, hidden_nf).sum(axis=1)
    g = silu(gh @ P(params["g_w1"]) + P(params["g_b1"]))
    pred = g @ P(params["g_w2"]) + P(params["g_b2"])
    return pred[:, 0]


# --------------------------------------------------------------------------- demo
if __name__ == "__main__":
    key = jax.random.PRNGKey(0)
    batch, n_nodes = 2, 8
    n_total = batch * n_nodes
    in_node_nf, in_edge_nf, hidden_nf, m, n_layers = 5, 2, 32, 4, 4

    k_h, k_x, k_e, k_p = jax.random.split(key, 4)
    h0 = jax.random.normal(k_h, (n_total, in_node_nf), jnp.float32)
    x = jax.random.normal(k_x, (n_total, 3), jnp.float32)

    # batched fully-connected graphs without self loops (E = B * n * (n-1) = 112)
    rows, cols = [], []
    for b in range(batch):
        for i in range(n_nodes):
            for j in range(n_nodes):
                if i != j:
                    rows.append(b * n_nodes + i)
                    cols.append(b * n_nodes + j)
    row = jnp.array(rows, jnp.int32)
    col = jnp.array(cols, jnp.int32)
    n_edges = row.shape[0]
    edge_attr = jax.random.normal(k_e, (n_edges, in_edge_nf), jnp.float32)
    node_mask = jnp.ones((n_total, 1), jnp.float32)
    edge_mask = jnp.ones((n_edges, 1), jnp.float32)

    params = init_mcegnn_params(k_p, in_node_nf, in_edge_nf, hidden_nf, m, n_layers)
    common = dict(hidden_nf=hidden_nf, m=m, n_layers=n_layers, n_nodes=n_nodes,
                  coords_weight=1.0)

    # correctness gate: exact (f32) gather/scatter path vs. float64 NumPy reference
    pred_f32 = mcegnn_forward(params, h0, x, row, col, edge_attr, node_mask, edge_mask,
                              gather_dtype=jnp.float32, **common)
    jax.block_until_ready(pred_f32)
    ref = mcegnn_reference(params, h0, x, row, col, edge_attr, node_mask, edge_mask, **common)
    err = float(np.max(np.abs(np.asarray(pred_f32, np.float64) - ref)))
    scale = 1.0 + float(np.max(np.abs(ref)))
    assert err <= 2.5e-2 * scale, f"kernel/reference mismatch: err={err}, scale={scale}"

    # fast path: bf16 one-hot gather/scatter (one-hots exact, payload ~1e-3 rel err)
    pred = mcegnn_forward(params, h0, x, row, col, edge_attr, node_mask, edge_mask,
                          gather_dtype=jnp.bfloat16, **common)
    jax.block_until_ready(pred)
    assert pred.shape == (batch,)
    assert bool(jnp.all(jnp.isfinite(pred)))
    print("KERNEL_OK")
</pallas_src>

<mosaic_0001>
module attributes {stable_mosaic.version = 11 : i64} {
  func.func @_embed_kernel(%arg0: memref<16x5xf32, #tpu.memory_space<vmem>>, %arg1: memref<5x32xf32, #tpu.memory_space<vmem>>, %arg2: memref<1x32xf32, #tpu.memory_space<vmem>>, %arg3: memref<16x32xf32, #tpu.memory_space<vmem>>) attributes {dimension_semantics = [], scalar_prefetch = 0 : i64, scratch_operands = 0 : i64, tpu.core_type = #tpu.core_type<tc>} {
    %c0 = arith.constant 0 : index
    %c0_0 = arith.constant 0 : index
    %0 = vector.load %arg0[%c0, %c0_0] : memref<16x5xf32, #tpu.memory_space<vmem>>, vector<16x5xf32>
    %c0_1 = arith.constant 0 : index
    %c0_2 = arith.constant 0 : index
    %1 = vector.load %arg1[%c0_1, %c0_2] : memref<5x32xf32, #tpu.memory_space<vmem>>, vector<5x32xf32>
    %cst = arith.constant dense<0.000000e+00> : vector<16x32xf32>
    %2 = tpu.matmul %0, %1, %cst {dimension_numbers = #tpu.dot_dimension_numbers<[1], [0], [0], [1], [0, 0, 1, 1], [], []>} : vector<16x5xf32>, vector<5x32xf32>, vector<16x32xf32> -> vector<16x32xf32>
    %c0_3 = arith.constant 0 : index
    %c0_4 = arith.constant 0 : index
    %3 = vector.load %arg2[%c0_3, %c0_4] : memref<1x32xf32, #tpu.memory_space<vmem>>, vector<1x32xf32>
    %4 = vector.broadcast %3 : vector<1x32xf32> to vector<16x32xf32>
    %5 = arith.addf %2, %4 : vector<16x32xf32>
    %c0_5 = arith.constant 0 : index
    %c0_6 = arith.constant 0 : index
    %6 = vector.load %arg3[%c0_5, %c0_6] : memref<16x32xf32, #tpu.memory_space<vmem>>, vector<16x32xf32>
    tpu.vector_store %arg3[%c0_5, %c0_6], %5 {strides = array<i32>} : memref<16x32xf32, #tpu.memory_space<vmem>>, vector<16x32xf32>,
    return
  }
}

</mosaic_0001>

<llo_original>
// kernel: tpu_custom_call.1
$region0: #{tpu_custom_call.1}
  #allocation0 [shape = 'u32[]', space=smem, size = 0x4, offset = 0x4, fixed_abs, tag = 'smem constant byte address 0x4 - core index']
  #allocation1 [shape = 'u32[144,128]{1,0:T(1,128)}', space=vmem, size = 0x12000, scoped, tag = 'internal scratch']
  %s0 = inlined_call_operand.vmem [shape: f32[16,5], index: 0, kind: input, shape index: {}]
  %s1 = inlined_call_operand.vmem [shape: f32[5,32], index: 1, kind: input, shape index: {}]
  %s2 = inlined_call_operand.vmem [shape: f32[1,32], index: 2, kind: input, shape index: {}]
  %s3 = inlined_call_operand.hbm [shape: f32[16,32], index: 3, kind: output, shape index: {}]
  %s4 = sld [smem:[#allocation0]]
  $region22: #{tpu_custom_call.1} parent=0
    _
  %s6 = ssub.s32 1, %s4
  %s7 = scalar_select 0, %s6, %s4
  $region1: #{tpu_custom_call.1} parent=0
    #allocation2 [shape = 'u8[8192]{0}', space=vmem, size = 0x2000, scoped, tag = 'output window, operand 0, single buffered']
    #allocation3 [shape = 's32[1]{0}', space=sflag, size = 0x4, scoped, tag = 'scoped memory for tpu_custom_call.1']
    %8 = vsyncpa [#allocation3], 0
    // Predicated region
    $region2: #{tpu_custom_call.1} parent=1 // pred_check
      _
    $region3: #{tpu_custom_call.1} parent=1 // pred_check_branch
      %10 = sbr.rel (0) target = $region5
    $region4: #{tpu_custom_call.1} parent=1 // pred_region
      _
    $region5: #{tpu_custom_call.1} parent=1 // pred_fallthru
      _
    // Predicated region
    $region6: #{tpu_custom_call.1} parent=1 // pred_check
      _
    $region7: #{tpu_custom_call.1} parent=1 // pred_check_branch
      %12 = sbr.rel (0) target = $region9
    $region8: #{tpu_custom_call.1} parent=1 // pred_region
      _
    $region9: #{tpu_custom_call.1} parent=1 // pred_fallthru
      _
    // Predicated region
    $region10: #{tpu_custom_call.1} parent=1 // pred_check
      _
    $region11: #{tpu_custom_call.1} parent=1 // pred_check_branch
      %14 = sbr.rel (0) target = $region13
    $region12: #{tpu_custom_call.1} parent=1 // pred_region
      _
    $region13: #{tpu_custom_call.1} parent=1 // pred_fallthru
      _
    %v15 = vld [vmem:[%s0] sm:$0xff]
    %v16 = vld [vmem:[%s0 + $0x8] sm:$0xff]
    %v17 = vld [vmem:[%s1] sm:$0x1f]
    %v18 = vld [vmem:[%s2] sm:$0x1]
    %v20 = vlaneseq
    %v21 = vshrl.u32 %v20, 7
    %v22 = vsub.s32 0, %v21
    %v23 = vrot.slane %v18, %v22
    %vm25 = vcmask 39936
    %v27 = vsel %vm25, %v15, 0
    %v30 = vsel %vm25, %v16, 0
    %vm32 = vcmask 1044480
    %v34 = vsel %vm32, %v17, 0
    %36 = vmatprep.subr.mxu0 0.0
    %37 = vmatpush1.msra.mxu0 %v34
    %38 = vmatprep.subr.mxu0 0.0
    %39 = vmatpush1.msra.mxu0 0.0
    %40 = vmatprep.subr.mxu0 0.0
    %41 = vmatpush1.msra.mxu0 0.0
    %42 = vmatprep.subr.mxu0 0.0
    %43 = vmatpush1.msra.mxu0 0.0
    %44 = vmatprep.subr.mxu0 0.0
    %45 = vmatpush1.msra.mxu0 0.0
    %46 = vmatprep.subr.mxu0 0.0
    %47 = vmatpush1.msra.mxu0 0.0
    %48 = vmatprep.subr.mxu0 0.0
    %49 = vmatpush1.msra.mxu0 0.0
    %50 = vmatprep.subr.mxu0 0.0
    %51 = vmatpush1.msra.mxu0 0.0
    %52 = vmatprep.subr.mxu0 0.0
    %53 = vmatpush1.msra.mxu0 0.0
    %54 = vmatprep.subr.mxu0 0.0
    %55 = vmatpush1.msra.mxu0 0.0
    %56 = vmatprep.subr.mxu0 0.0
    %57 = vmatpush1.msra.mxu0 0.0
    %58 = vmatprep.subr.mxu0 0.0
    %59 = vmatpush1.msra.mxu0 0.0
    %60 = vmatprep.subr.mxu0 0.0
    %61 = vmatpush1.msra.mxu0 0.0
    %62 = vmatprep.subr.mxu0 0.0
    %63 = vmatpush1.msra.mxu0 0.0
    %64 = vmatprep.subr.mxu0 0.0
    %65 = vmatpush1.msra.mxu0 0.0
    %66 = vmatprep.subr.mxu0 0.0
    %67 = vmatpush1.msra.mxu0 0.0
    %68 = vmatprep.subr.mxu0 0.0
    %69 = vmatpush1.msra.mxu0 0.0
    %70 = vmatprep.subr.mxu0 0.0
    %71 = vmatpush1.msra.mxu0 0.0
    %72 = vmatprep.subr.mxu0 0.0
    %73 = vmatpush1.msra.mxu0 0.0
    %74 = vmatprep.subr.mxu0 0.0
    %75 = vmatpush1.msra.mxu0 0.0
    %76 = vmatprep.subr.mxu0 0.0
    %77 = vmatpush1.msra.mxu0 0.0
    %78 = vmatprep.subr.mxu0 0.0
    %79 = vmatpush1.msra.mxu0 0.0
    %80 = vmatprep.subr.mxu0 0.0
    %81 = vmatpush1.msra.mxu0 0.0
    %82 = vmatprep.subr.mxu0 0.0
    %83 = vmatpush1.msra.mxu0 0.0
    %84 = vmatprep.subr.mxu0 0.0
    %85 = vmatpush1.msra.mxu0 0.0
    %86 = vmatprep.subr.mxu0 0.0
    %87 = vmatpush1.msra.mxu0 0.0
    %88 = vmatprep.subr.mxu0 0.0
    %89 = vmatpush1.msra.mxu0 0.0
    %90 = vmatprep.subr.mxu0 0.0
    %91 = vmatpush1.msra.mxu0 0.0
    %92 = vmatprep.subr.mxu0 0.0
    %93 = vmatpush1.msra.mxu0 0.0
    %94 = vmatprep.subr.mxu0 0.0
    %95 = vmatpush1.msra.mxu0 0.0
    %96 = vmatprep.subr.mxu0 0.0
    %97 = vmatpush1.msra.mxu0 0.0
    %98 = vmatprep.subr.mxu0 0.0
    %99 = vmatpush1.msra.mxu0 0.0
    %100 = vmatprep.mubr.f32.mxu0 0.0
    %101 = vmatmul.mubr.f32.gmra.mrb[0].mxu0 %v27
    %v102 = vpop.f32.mrb[0].mxu0
    %v103 = vadd.f32 %v23, %v102
    %v104 = vpop.f32.mrb[0].mxu0
    %105 = vmatprep.mubr.f32.mxu0 0.0
    %106 = vmatmul.mubr.f32.gmra.mrb[0].mxu0 %v30
    %v107 = vpop.f32.mrb[0].mxu0
    %v108 = vadd.f32 %v23, %v107
    %v109 = vpop.f32.mrb[0].mxu0
    %110 = vdwg.mxu0
    %vm111 = vcmask 261120
    %112 = vst.msk [vmem:[#allocation2] sm:$0xff] %vm111, %v103
    %113 = vst.msk [vmem:[#allocation2 + $0x8] sm:$0xff] %vm111, %v108
    // Predicated region
    $region14: #{tpu_custom_call.1} parent=1 // pred_check
      _
    $region15: #{tpu_custom_call.1} parent=1 // pred_check_branch
      %115 = sbr.rel (0) target = $region17
    $region16: #{tpu_custom_call.1} parent=1 // pred_region
      %s117 = ssub.s32 256, 256
      %118 = vsyncadd [#allocation3], %s117
      %s119 = sshll.u32 [#allocation2], 4
      %s120 = int_to_ptr.vmem [resolvable:$true] %s119
      %125 = dma.vmem_to_hbm [thread:$0]  %s120, 256, %s3, [#allocation3], 128, 128, 8
    $region17: #{tpu_custom_call.1} parent=1 // pred_fallthru
      _
    // Predicated region
    $region18: #{tpu_custom_call.1} parent=1 // pred_check
      _
    $region19: #{tpu_custom_call.1} parent=1 // pred_check_branch
      %127 = sbr.rel (0) target = $region21
    $region20: #{tpu_custom_call.1} parent=1 // pred_region
      %128 = dma.done [#allocation3], 256
    $region21: #{tpu_custom_call.1} parent=1 // pred_fallthru
      _
    %129 = vsyncpa [#allocation3], 1

</llo_original>
